<compile_context>
chip_gen: v5e
topology: v5e:2x2
jax: 0.10.0
libtpu: 0.0.40
codegen_flags: <defaults>
</compile_context>

<pallas_src>
import jax
import jax.numpy as jnp
from jax import lax
from jax.experimental import pallas as pl
from jax.experimental.pallas import tpu as pltpu


LANE = 128
MAX_BLOCK_ROWS = 2048          # 2048*128*4B = 1 MiB per f32 input buffer
MAX_POINT_LANES = 16384        # lane tile for the point-loss error kernel
VMEM_LIMIT = 32 * 1024 * 1024  # explicit scoped-VMEM budget (safe on v5e/v6e/v7x)


# ------------------------------ helpers ------------------------------------ #

def _cdiv(a, b):
    return -(-a // b)


def _neg_expm1_neg(x):
    """-expm1(-x) == 1 - exp(-x), numerically stable for small x >= 0."""
    series = x * (1.0 - 0.5 * x * (1.0 - x / 3.0))   # x - x^2/2 + x^3/6
    return jnp.where(x < 1e-3, series, 1.0 - jnp.exp(-x))


# ------------------------------ generic tiled reduction --------------------- #

def _tiled_sums(arrays, scalars, elem_fn, num_terms):
    """Stream `arrays` once through VMEM and return `num_terms` global sums.

    arrays  : list of equally-sized arrays (any shape, any float dtype).
    scalars : list of scalars delivered to the kernel through SMEM.
    elem_fn : (list_of_f32_blocks, list_of_f32_scalars) -> tuple of num_terms
              elementwise f32 arrays (same shape as the blocks).
    """
    flats = [jnp.ravel(a) for a in arrays]
    n = int(flats[0].shape[0])
    scal_vals = [jnp.asarray(s, jnp.float32) for s in scalars]
    num_scalars = len(scal_vals)

    n_main = (n // LANE) * LANE
    rows = n_main // LANE

    # Lane tail (< 128 elements): plain JAX; keeps the main array un-padded.
    if n_main < n:
        tails = [f[n_main:].astype(jnp.float32) for f in flats]
        tail_sums = [jnp.sum(t) for t in elem_fn(tails, scal_vals)]
    else:
        tail_sums = [jnp.zeros((), jnp.float32)] * num_terms

    if rows == 0:
        return tuple(tail_sums)

    # Free reshape when n is a multiple of 128 (the common case).
    # TODO(synk): the f[:n_main] slice below is the one remaining copy for
    # non-128-multiple element counts; unavoidable without exotic 1-D layouts.
    mains = [(f if n_main == n else f[:n_main]).reshape(rows, LANE) for f in flats]
    num_arrays = len(mains)

    if rows <= MAX_BLOCK_ROWS:
        block_rows, nblocks = rows, 1          # block == full dims, no masking
    else:
        block_rows, nblocks = MAX_BLOCK_ROWS, _cdiv(rows, MAX_BLOCK_ROWS)

    # Two grid slices so the leading "parallel" axis can shard across
    # TensorCores on multi-core chips (v7x); harmless on 1-TC chips.
    nslices = 2 if nblocks >= 2 else 1
    bps = _cdiv(nblocks, nslices)
    needs_mask = (nslices * bps * block_rows) != rows
    has_scal = num_scalars > 0

    def kernel(*refs):
        if has_scal:
            scal_ref, refs = refs[0], refs[1:]
        in_refs = refs[:num_arrays]
        out_refs = refs[num_arrays:num_arrays + num_terms]
        acc_refs = refs[num_arrays + num_terms:]
        s = pl.program_id(0)
        b = pl.program_id(1)

        @pl.when(b == 0)
        def _init():
            for acc in acc_refs:
                acc[...] = jnp.zeros_like(acc)

        tiles = [r[...].astype(jnp.float32) for r in in_refs]
        scals = [scal_ref[0, k] for k in range(num_scalars)] if has_scal else []
        terms = elem_fn(tiles, scals)
        if needs_mask:
            # mask rows past the valid range (partial / fully-OOB blocks)
            start = (s * bps + b) * block_rows
            rid = start + lax.broadcasted_iota(jnp.int32, (block_rows, LANE), 0)
            valid = rid < rows
            terms = [jnp.where(valid, t, 0.0) for t in terms]
        for acc, t in zip(acc_refs, terms):
            acc[...] += t                      # pure VPU adds, no reduce per step

        @pl.when(b == bps - 1)
        def _fin():
            # per-lane partial sums only; the final 128-wide reduce is in XLA
            for out, acc in zip(out_refs, acc_refs):
                out[...] = jnp.sum(acc[...], axis=0, keepdims=True
                                   ).reshape(1, 1, LANE)

    def in_map(s, b):
        # clamp fully-out-of-range block indices (their rows are masked to 0)
        return (jnp.minimum(s * bps + b, nblocks - 1), 0)

    in_specs = []
    operands = []
    if has_scal:
        in_specs.append(pl.BlockSpec(memory_space=pltpu.MemorySpace.SMEM))
        operands.append(jnp.stack(scal_vals).reshape(1, num_scalars))
    in_specs += [pl.BlockSpec((block_rows, LANE), in_map) for _ in mains]
    operands += mains

    out_shape = tuple(jax.ShapeDtypeStruct((nslices, 1, LANE), jnp.float32)
                      for _ in range(num_terms))
    out_specs = tuple(pl.BlockSpec((1, 1, LANE), lambda s, b: (s, 0, 0))
                      for _ in range(num_terms))

    outs = pl.pallas_call(
        kernel,
        out_shape=out_shape,
        grid=(nslices, bps),
        in_specs=in_specs,
        out_specs=out_specs,
        scratch_shapes=[pltpu.VMEM((block_rows, LANE), jnp.float32)
                        for _ in range(num_terms)],
        compiler_params=pltpu.CompilerParams(
            dimension_semantics=("parallel", "arbitrary"),
            vmem_limit_bytes=VMEM_LIMIT),
    )(*operands)

    return tuple(jnp.sum(o) + t for o, t in zip(outs, tail_sums))


# ------------------------------ elementwise kernels ------------------------- #

def _sid_elem_kernel(p_ref, t_ref, o_ref):
    # scale-invariant depth loss, elementwise branch (mask is None)
    p = p_ref[...].astype(jnp.float32)
    t = t_ref[...].astype(jnp.float32)
    o_ref[...] = 1.0 - jnp.minimum(p, t) / (jnp.maximum(p, t) + 1e-5)


def _point_err_kernel(p_ref, t_ref, e_ref):
    # e = ||pred - target||_2 per point; inputs channel-split (D, TM) so the
    # reduced axis is off the lane axis (cheap cross-sublane reduce, sqrt on EUP)
    d = p_ref[...].astype(jnp.float32) - t_ref[...].astype(jnp.float32)
    e_ref[...] = jnp.sqrt(jnp.sum(d * d, axis=0, keepdims=True))


# ------------------------------ module -------------------------------------- #

class GraphPallas:
    """Pallas port of the abstract `Graph` base module (loss math only)."""

    def __init__(self, cfg=None):
        # Reference __init__ registers no parameters.
        pass

    def forward(self, cfg, var, mode=None):
        # TODO(synk): forward() is abstract in the reference (raises NotImplementedError).
        raise NotImplementedError

    def compute_loss(self, cfg, var, mode=None):
        # TODO(synk): compute_loss() is abstract in the reference (raises NotImplementedError).
        raise NotImplementedError

    # --- concrete losses, kernelized ---

    def _elem_mean(self, pred, label, fn):
        pred = jnp.asarray(pred)            # keep native dtype (bf16 ok)
        n = pred.size
        label_arr = jnp.asarray(label)
        if label_arr.size == 1:
            # scalar label goes through SMEM; only `pred` is streamed
            (s,) = _tiled_sums(
                [pred], [label_arr.reshape(())],
                lambda ts, sc: (fn(ts[0] - sc[0]),), 1)
        else:
            if label_arr.shape != pred.shape:
                label_arr = jnp.broadcast_to(label_arr, pred.shape)
            (s,) = _tiled_sums(
                [pred, label_arr], [],
                lambda ts, sc: (fn(ts[0] - ts[1]),), 1)
        return s / n

    def L1_loss(self, pred, label=0):
        return self._elem_mean(pred, label, jnp.abs)

    def MSE_loss(self, pred, label=0):
        return self._elem_mean(pred, label, jnp.square)

    def scale_invariant_depth_loss(self, depth_pred, depth_target, mask=None):
        p = jnp.asarray(depth_pred)
        t = jnp.asarray(depth_target)
        if mask is None:
            return self._sid_elementwise(p, t)
        m = jnp.asarray(mask)
        m = m.astype(jnp.float32) if m.dtype != jnp.float32 else m
        if m.shape != p.shape:
            m = jnp.broadcast_to(m, p.shape)

        def terms(ts, sc):
            mn = jnp.minimum(ts[0], ts[1])
            mx = jnp.maximum(ts[0], ts[1])
            loss = 1.0 - mn / (mx + 1e-5)
            return (loss * ts[2], ts[2])

        s_lm, s_m = _tiled_sums([p, t, m], [], terms, 2)
        return s_lm / (s_m + 1e-5)

    def _sid_elementwise(self, p, t):
        shape = p.shape
        pf, tf = jnp.ravel(p), jnp.ravel(t)
        n = int(pf.shape[0])
        n_main = (n // LANE) * LANE
        rows = n_main // LANE
        parts = []
        if rows:
            p2 = (pf if n_main == n else pf[:n_main]).reshape(rows, LANE)
            t2 = (tf if n_main == n else tf[:n_main]).reshape(rows, LANE)
            block_rows = rows if rows <= MAX_BLOCK_ROWS else MAX_BLOCK_ROWS
            nblk = _cdiv(rows, block_rows)
            spec = pl.BlockSpec((block_rows, LANE), lambda i: (i, 0))
            out2 = pl.pallas_call(
                _sid_elem_kernel,
                out_shape=jax.ShapeDtypeStruct((rows, LANE), jnp.float32),
                grid=(nblk,),
                in_specs=[spec, spec],
                out_specs=spec,
                compiler_params=pltpu.CompilerParams(
                    dimension_semantics=("parallel",),
                    vmem_limit_bytes=VMEM_LIMIT),
            )(p2, t2)
            parts.append(out2.reshape(-1))
        if n_main < n:
            pt_ = pf[n_main:].astype(jnp.float32)
            tt_ = tf[n_main:].astype(jnp.float32)
            parts.append(1.0 - jnp.minimum(pt_, tt_) /
                         (jnp.maximum(pt_, tt_) + 1e-5))
        flat = parts[0] if len(parts) == 1 else jnp.concatenate(parts)
        return flat.reshape(shape)

    def point_loss(self, point_pred, point_target, mask):
        p = jnp.asarray(point_pred)        # (B, N, D)
        t = jnp.asarray(point_target)
        B, N, D = p.shape
        M = B * N
        # TODO(synk): this channel-split transpose is one extra XLA HBM pass
        # over p/t; drop it if the producer can emit (D, B, N) directly.
        p_t = jnp.moveaxis(p, -1, 0).reshape(D, M)
        t_t = jnp.moveaxis(t, -1, 0).reshape(D, M)

        tm = M if M <= MAX_POINT_LANES else MAX_POINT_LANES
        nblk = _cdiv(M, tm)
        in_spec = pl.BlockSpec((D, tm), lambda i: (0, i))
        e = pl.pallas_call(
            _point_err_kernel,
            out_shape=jax.ShapeDtypeStruct((1, M), jnp.float32),
            grid=(nblk,),
            in_specs=[in_spec, in_spec],
            out_specs=pl.BlockSpec((1, tm), lambda i: (0, i)),
            compiler_params=pltpu.CompilerParams(
                dimension_semantics=("parallel",),
                vmem_limit_bytes=VMEM_LIMIT),
        )(p_t, t_t).reshape(B, N)          # per-point L2 error

        # TODO(synk): torch.quantile (per-batch median) needs a global sort;
        # no clean Pallas sort primitive, so this small glue stays in XLA.
        c = 2.0 * jnp.quantile(e, 0.5, axis=1, keepdims=True)     # (B, 1)
        c = lax.stop_gradient(c)                                  # .detach()
        x = e / c          # fold per-batch scale here (tiny pass); matches torch

        m = jnp.asarray(mask)
        m = m.astype(jnp.float32) if m.dtype != jnp.float32 else m
        m = m.reshape(B, N)

        def terms(ts, sc):
            z = 0.5 * ts[0] * ts[0]
            return (_neg_expm1_neg(z) * ts[1], ts[1])

        s_lm, s_m = _tiled_sums([x, m], [], terms, 2)
        return s_lm / (s_m + 1e-5)


# ------------------------------ demo / check -------------------------------- #

if __name__ == "__main__":
    key = jax.random.PRNGKey(0)
    keys = jax.random.split(key, 11)

    graph = GraphPallas(cfg=None)

    # L1 / MSE on an image-like tensor (B, C, H, W) = (2, 4, 16, 16)
    x = jax.random.normal(keys[0], (2, 4, 16, 16), jnp.float32)
    y = jax.random.normal(keys[1], (2, 4, 16, 16), jnp.float32)
    l1 = graph.L1_loss(x, y)
    mse = graph.MSE_loss(x)                       # default scalar label = 0

    # native-bf16 inputs (upcast per tile inside the kernel)
    xb = x.astype(jnp.bfloat16)
    yb = y.astype(jnp.bfloat16)
    l1_bf16 = graph.L1_loss(xb, yb)

    # element count not a multiple of 128 (exercises the lane-tail path)
    x_odd = jax.random.normal(keys[2], (5, 7, 13), jnp.float32)
    mse_odd = graph.MSE_loss(x_odd)

    # multi-block, two-slice reduction (exercises masking + parallel split)
    x_big = jax.random.normal(keys[3], (5, 1024, 128), jnp.float32)
    y_big = jax.random.normal(keys[4], (5, 1024, 128), jnp.float32)
    l1_big = graph.L1_loss(x_big, y_big)

    # scale-invariant depth loss on (B, H, W) = (2, 8, 8)
    d_pred = jax.nn.softplus(jax.random.normal(keys[5], (2, 8, 8), jnp.float32)) + 0.1
    d_tgt = jax.nn.softplus(jax.random.normal(keys[6], (2, 8, 8), jnp.float32)) + 0.1
    d_mask = (jax.random.uniform(keys[7], (2, 8, 8)) > 0.3).astype(jnp.float32)
    sid_masked = graph.scale_invariant_depth_loss(d_pred, d_tgt, d_mask)
    sid_elem = graph.scale_invariant_depth_loss(d_pred, d_tgt, None)

    # point loss on (B, N, 3) = (2, 16, 3) with mask (B, N, 1)
    p_pred = jax.random.normal(keys[8], (2, 16, 3), jnp.float32)
    p_tgt = jax.random.normal(keys[9], (2, 16, 3), jnp.float32)
    p_mask = (jax.random.uniform(keys[10], (2, 16, 1)) > 0.2).astype(jnp.float32)
    pt_loss = graph.point_loss(p_pred, p_tgt, p_mask)

    results = jax.block_until_ready(
        (l1, mse, l1_bf16, mse_odd, l1_big, sid_masked, sid_elem, pt_loss))

    # pure-JAX references (mirror the torch formulas)
    ref_l1 = jnp.mean(jnp.abs(x - y))
    ref_mse = jnp.mean(x ** 2)
    ref_l1_bf16 = jnp.mean(jnp.abs(xb.astype(jnp.float32) - yb.astype(jnp.float32)))
    ref_mse_odd = jnp.mean(x_odd ** 2)
    ref_l1_big = jnp.mean(jnp.abs(x_big - y_big))
    mn, mx = jnp.minimum(d_pred, d_tgt), jnp.maximum(d_pred, d_tgt)
    ref_sid_e = 1.0 - mn / (mx + 1e-5)
    ref_sid_m = jnp.sum(ref_sid_e * d_mask) / (jnp.sum(d_mask) + 1e-5)
    e_ref = jnp.linalg.norm(p_pred - p_tgt, axis=-1, keepdims=True)
    c_ref = 2.0 * jnp.quantile(e_ref, 0.5, axis=1, keepdims=True)
    ref_pt_e = -jnp.expm1(-0.5 * (e_ref / c_ref) ** 2)
    ref_pt = jnp.sum(ref_pt_e * p_mask) / (jnp.sum(p_mask) + 1e-5)

    assert jnp.allclose(results[0], ref_l1, atol=1e-5), "L1 mismatch"
    assert jnp.allclose(results[1], ref_mse, atol=1e-5), "MSE mismatch"
    assert jnp.allclose(results[2], ref_l1_bf16, atol=1e-5), "bf16 L1 mismatch"
    assert jnp.allclose(results[3], ref_mse_odd, atol=1e-5), "odd-size MSE mismatch"
    assert jnp.allclose(results[4], ref_l1_big, atol=1e-4), "big L1 mismatch"
    assert jnp.allclose(results[5], ref_sid_m, atol=1e-5), "SID(masked) mismatch"
    assert jnp.allclose(results[6], ref_sid_e, atol=1e-5), "SID(elem) mismatch"
    assert jnp.allclose(results[7], ref_pt, atol=1e-5), "point_loss mismatch"

    print("KERNEL_OK")
</pallas_src>

<mosaic_0001>
module attributes {stable_mosaic.version = 11 : i64} {
  func.func @kernel(%arg0: i32, %arg1: i32, %arg2: memref<16x128xf32, #tpu.memory_space<vmem>>, %arg3: memref<16x128xf32, #tpu.memory_space<vmem>>, %arg4: memref<1x1x128xf32, #tpu.memory_space<vmem>>, %arg5: memref<16x128xf32, #tpu.memory_space<vmem>>) attributes {dimension_semantics = [#tpu.dimension_semantics<parallel>, #tpu.dimension_semantics<arbitrary>], iteration_bounds = array<i64: 1, 1>, scalar_prefetch = 0 : i64, scratch_operands = 1 : i64, tpu.core_type = #tpu.core_type<tc>, window_params = [{transform_indices = @transform_0, window_bounds = array<i64: 16, 128>}, {transform_indices = @transform_1, window_bounds = array<i64: 16, 128>}, {transform_indices = @transform_2, window_bounds = array<i64: 1, 1, 128>}]} {
    %c0_i32 = arith.constant 0 : i32
    %0 = arith.cmpi eq, %arg1, %c0_i32 : i32
    %1 = arith.extui %0 : i1 to i32
    %c0_i32_0 = arith.constant 0 : i32
    %2 = arith.cmpi ne, %1, %c0_i32_0 : i32
    scf.if %2 {
      %cst = arith.constant 0.000000e+00 : f32
      %13 = vector.broadcast %cst : f32 to vector<16x128xf32>
      %c0_10 = arith.constant 0 : index
      %c0_11 = arith.constant 0 : index
      %14 = vector.load %arg5[%c0_10, %c0_11] : memref<16x128xf32, #tpu.memory_space<vmem>>, vector<16x128xf32>
      tpu.vector_store %arg5[%c0_10, %c0_11], %13 {strides = array<i32>} : memref<16x128xf32, #tpu.memory_space<vmem>>, vector<16x128xf32>,
    } else {
    }
    %c0 = arith.constant 0 : index
    %c0_1 = arith.constant 0 : index
    %3 = vector.load %arg2[%c0, %c0_1] : memref<16x128xf32, #tpu.memory_space<vmem>>, vector<16x128xf32>
    %c0_2 = arith.constant 0 : index
    %c0_3 = arith.constant 0 : index
    %4 = vector.load %arg3[%c0_2, %c0_3] : memref<16x128xf32, #tpu.memory_space<vmem>>, vector<16x128xf32>
    %5 = arith.subf %3, %4 : vector<16x128xf32>
    %6 = math.absf %5 : vector<16x128xf32>
    %c0_4 = arith.constant 0 : index
    %c0_5 = arith.constant 0 : index
    %7 = vector.load %arg5[%c0_4, %c0_5] : memref<16x128xf32, #tpu.memory_space<vmem>>, vector<16x128xf32>
    %8 = arith.addf %7, %6 : vector<16x128xf32>
    %c0_6 = arith.constant 0 : index
    %c0_7 = arith.constant 0 : index
    %9 = vector.load %arg5[%c0_6, %c0_7] : memref<16x128xf32, #tpu.memory_space<vmem>>, vector<16x128xf32>
    tpu.vector_store %arg5[%c0_6, %c0_7], %8 {strides = array<i32>} : memref<16x128xf32, #tpu.memory_space<vmem>>, vector<16x128xf32>,
    %c0_i32_8 = arith.constant 0 : i32
    %10 = arith.cmpi eq, %arg1, %c0_i32_8 : i32
    %11 = arith.extui %10 : i1 to i32
    %c0_i32_9 = arith.constant 0 : i32
    %12 = arith.cmpi ne, %11, %c0_i32_9 : i32
    scf.if %12 {
      %c0_10 = arith.constant 0 : index
      %c0_11 = arith.constant 0 : index
      %13 = vector.load %arg5[%c0_10, %c0_11] : memref<16x128xf32, #tpu.memory_space<vmem>>, vector<16x128xf32>
      %cst = arith.constant dense<0.000000e+00> : vector<128xf32>
      %14 = vector.multi_reduction <add>, %13, %cst [0] : vector<16x128xf32> to vector<128xf32>
      %15 = vector.shape_cast %14 : vector<128xf32> to vector<1x128xf32>
      %16 = vector.shape_cast %15 : vector<1x128xf32> to vector<1x1x128xf32>
      %c0_12 = arith.constant 0 : index
      %c0_13 = arith.constant 0 : index
      %c0_14 = arith.constant 0 : index
      %17 = vector.load %arg4[%c0_12, %c0_13, %c0_14] : memref<1x1x128xf32, #tpu.memory_space<vmem>>, vector<1x1x128xf32>
      tpu.vector_store %arg4[%c0_12, %c0_13, %c0_14], %16 {strides = array<i32>} : memref<1x1x128xf32, #tpu.memory_space<vmem>>, vector<1x1x128xf32>,
    } else {
    }
    return
  }
  func.func @transform_0(%arg0: i32, %arg1: i32) -> (i32, i32) {
    %c1_i32 = arith.constant 1 : i32
    %0 = arith.muli %arg0, %c1_i32 : i32
    %1 = arith.addi %0, %arg1 : i32
    %c0_i32 = arith.constant 0 : i32
    %2 = arith.minsi %1, %c0_i32 : i32
    %c0_i32_0 = arith.constant 0 : i32
    %c0_i32_1 = arith.constant 0 : i32
    return %2, %c0_i32_0 : i32, i32
  }
  func.func @transform_1(%arg0: i32, %arg1: i32) -> (i32, i32) {
    %c1_i32 = arith.constant 1 : i32
    %0 = arith.muli %arg0, %c1_i32 : i32
    %1 = arith.addi %0, %arg1 : i32
    %c0_i32 = arith.constant 0 : i32
    %2 = arith.minsi %1, %c0_i32 : i32
    %c0_i32_0 = arith.constant 0 : i32
    %c0_i32_1 = arith.constant 0 : i32
    return %2, %c0_i32_0 : i32, i32
  }
  func.func @transform_2(%arg0: i32, %arg1: i32) -> (i32, i32, i32) {
    %c0_i32 = arith.constant 0 : i32
    %c0_i32_0 = arith.constant 0 : i32
    %c0_i32_1 = arith.constant 0 : i32
    return %arg0, %c0_i32, %c0_i32_0 : i32, i32, i32
  }
}

</mosaic_0001>

<llo_original>
// kernel: tpu_custom_call.1
$region0: #{tpu_custom_call.1}
  #allocation0 [shape = 'u32[]', space=smem, size = 0x4, offset = 0x4, fixed_abs, tag = 'smem constant byte address 0x4 - core index']
  #allocation1 [shape = 'u32[72,128]{1,0:T(1,128)}', space=vmem, size = 0x9000, scoped, tag = 'internal scratch']
  #allocation2 [shape = 'f32[16,128]{1,0:T(8,128)}', space=vmem, size = 0x2000, scoped, tag = 'scratch operand']
  %s0 = inlined_call_operand.hbm [shape: f32[16,128], index: 0, kind: input, shape index: {}]
  %s1 = inlined_call_operand.hbm [shape: f32[16,128], index: 1, kind: input, shape index: {}]
  %s2 = inlined_call_operand.hbm [shape: f32[1,1,128], index: 2, kind: output, shape index: {}]
  %s3 = sld [smem:[#allocation0]]
  $region34: #{tpu_custom_call.1} parent=0
    _
  %s5 = ssub.s32 1, %s3
  %s6 = scalar_select 0, %s5, %s3
  $region1: #{tpu_custom_call.1} parent=0
    #allocation3 [shape = 'u8[8192]{0}', space=vmem, size = 0x2000, scoped, tag = 'input window, operand 0, single buffered']
    #allocation4 [shape = 's32[1]{0}', space=sflag, size = 0x4, scoped, tag = 'scoped memory for tpu_custom_call.1']
    #allocation5 [shape = 's32[1]{0}', space=sflag, size = 0x4, scoped, tag = 'scoped memory for tpu_custom_call.1']
    #allocation6 [shape = 'u8[8192]{0}', space=vmem, size = 0x2000, scoped, tag = 'input window, operand 1, single buffered']
    #allocation7 [shape = 's32[1]{0}', space=sflag, size = 0x4, scoped, tag = 'scoped memory for tpu_custom_call.1']
    #allocation8 [shape = 'u8[512]{0}', space=vmem, size = 0x400, scoped, tag = 'output window, operand 0, single buffered']
    %7 = vsyncpa [#allocation4], 0
    %8 = vsyncpa [#allocation7], 0
    %9 = vsyncpa [#allocation5], 0
    // Predicated region
    $region2: #{tpu_custom_call.1} parent=1 // pred_check
      _
    $region3: #{tpu_custom_call.1} parent=1 // pred_check_branch
      %11 = sbr.rel (0) target = $region5
    $region4: #{tpu_custom_call.1} parent=1 // pred_region
      %s12 = sadd.s32 0, 0
      %p13 = scmp.lt.s32.totalorder %s12, 0
      %s14 = scalar_select %p13, %s12, 0
      %s15 = smul.u32 2, %s14
      %17 = vsyncadd [#allocation4], 0
      %s18 = smul.addr %s15, 8
      %s19 = scalar_lea.hbm %s0, %s18
      %s20 = sshll.u32 %s19, 4
      %s21 = int_to_ptr.hbm [resolvable:$true] %s20
      %s22 = sshll.u32 [#allocation3], 4
      %s23 = int_to_ptr.vmem [resolvable:$true] %s22
      %28 = dma.hbm_to_vmem [thread:$0]  %s21, 256, %s23, [#allocation4], 128, 128, 8
    $region5: #{tpu_custom_call.1} parent=1 // pred_fallthru
      _
    // Predicated region
    $region6: #{tpu_custom_call.1} parent=1 // pred_check
      _
    $region7: #{tpu_custom_call.1} parent=1 // pred_check_branch
      %30 = sbr.rel (0) target = $region9
    $region8: #{tpu_custom_call.1} parent=1 // pred_region
      %s31 = sadd.s32 0, 0
      %p32 = scmp.lt.s32.totalorder %s31, 0
      %s33 = scalar_select %p32, %s31, 0
      %s34 = smul.u32 2, %s33
      %36 = vsyncadd [#allocation7], 0
      %s37 = smul.addr %s34, 8
      %s38 = scalar_lea.hbm %s1, %s37
      %s39 = sshll.u32 %s38, 4
      %s40 = int_to_ptr.hbm [resolvable:$true] %s39
      %s41 = sshll.u32 [#allocation6], 4
      %s42 = int_to_ptr.vmem [resolvable:$true] %s41
      %47 = dma.hbm_to_vmem [thread:$0]  %s40, 256, %s42, [#allocation7], 128, 128, 8
    $region9: #{tpu_custom_call.1} parent=1 // pred_fallthru
      _
    // Predicated region
    $region10: #{tpu_custom_call.1} parent=1 // pred_check
      _
    $region11: #{tpu_custom_call.1} parent=1 // pred_check_branch
      %49 = sbr.rel (0) target = $region13
    $region12: #{tpu_custom_call.1} parent=1 // pred_region
      %51 = dma.done [#allocation4], 256
    $region13: #{tpu_custom_call.1} parent=1 // pred_fallthru
      _
    // Predicated region
    $region14: #{tpu_custom_call.1} parent=1 // pred_check
      _
    $region15: #{tpu_custom_call.1} parent=1 // pred_check_branch
      %53 = sbr.rel (0) target = $region17
    $region16: #{tpu_custom_call.1} parent=1 // pred_region
      %55 = dma.done [#allocation7], 256
    $region17: #{tpu_custom_call.1} parent=1 // pred_fallthru
      _
    %s56 = sadd.s32 0, 0
    %p57 = scmp.lt.s32.totalorder %s56, 0
    %s58 = scalar_select %p57, %s56, 0
    %s59 = smul.u32 2, %s58
    %s60 = sadd.s32 0, 0
    %p61 = scmp.lt.s32.totalorder %s60, 0
    %s62 = scalar_select %p61, %s60, 0
    %s63 = smul.u32 2, %s62
    %p64 = scmp.eq.s32.totalorder 0, 0
    // Predicated region
    $region18: #{tpu_custom_call.1} parent=1 // pred_check
      %p65 = pneg %p64
    $region19: #{tpu_custom_call.1} parent=1 // pred_check_branch
      %67 = sbr.rel (%p65) target = $region21
    $region20: #{tpu_custom_call.1} parent=1 // pred_region
      %68 = vst [vmem:[#allocation2] sm:$0xff] 0.0
      %69 = vst [vmem:[#allocation2 + $0x8] sm:$0xff] 0.0
    $region21: #{tpu_custom_call.1} parent=1 // pred_fallthru
      _
    %v70 = vld [vmem:[#allocation3] sm:$0xff]
    %v71 = vld [vmem:[#allocation3 + $0x8] sm:$0xff]
    %v72 = vld [vmem:[#allocation6] sm:$0xff]
    %v73 = vld [vmem:[#allocation6 + $0x8] sm:$0xff]
    %v74 = vsub.f32 %v70, %v72
    %v75 = vsub.f32 %v71, %v73
    %v76 = vand.u32 2147483647, %v74
    %v77 = vand.u32 2147483647, %v75
    %v78 = vld [vmem:[#allocation2] sm:$0xff]
    %v79 = vld [vmem:[#allocation2 + $0x8] sm:$0xff]
    %v80 = vadd.f32 %v78, %v76
    %v81 = vadd.f32 %v79, %v77
    %82 = vst [vmem:[#allocation2] sm:$0xff] %v80
    %83 = vst [vmem:[#allocation2 + $0x8] sm:$0xff] %v81
    // Predicated region
    $region22: #{tpu_custom_call.1} parent=1 // pred_check
      %p84 = pneg %p64
    $region23: #{tpu_custom_call.1} parent=1 // pred_check_branch
      %86 = sbr.rel (%p84) target = $region25
    $region24: #{tpu_custom_call.1} parent=1 // pred_region
      %v87 = vld [vmem:[#allocation2] sm:$0xff]
      %v88 = vld [vmem:[#allocation2 + $0x8] sm:$0xff]
      %v89 = vadd.f32 %v87, %v88
      %v90 = vrot.slane %v89, 4
      %v91 = vadd.f32 %v89, %v90
      %v92 = vrot.slane %v91, 2
      %v93 = vadd.f32 %v91, %v92
      %v94 = vrot.slane %v93, 1
      %v95 = vadd.f32 %v93, %v94
      %96 = vst [vmem:[#allocation8] sm:$0x1] %v95
    $region25: #{tpu_custom_call.1} parent=1 // pred_fallthru
      _
    // Predicated region
    $region26: #{tpu_custom_call.1} parent=1 // pred_check
      _
    $region27: #{tpu_custom_call.1} parent=1 // pred_check_branch
      %98 = sbr.rel (0) target = $region29
    $region28: #{tpu_custom_call.1} parent=1 // pred_region
      %100 = vsyncadd [#allocation5], 0
      %s102 = sshll.u32 [#allocation8], 4
      %s103 = int_to_ptr.vmem [resolvable:$true] %s102
      %s104 = sshll.u32 %s2, 4
      %s105 = int_to_ptr.hbm [resolvable:$true] %s104
      %107 = dma.vmem_to_hbm [thread:$0]  %s103, 16, %s105, [#allocation5]
    $region29: #{tpu_custom_call.1} parent=1 // pred_fallthru
      _
    // Predicated region
    $region30: #{tpu_custom_call.1} parent=1 // pred_check
      _
    $region31: #{tpu_custom_call.1} parent=1 // pred_check_branch
      %109 = sbr.rel (0) target = $region33
    $region32: #{tpu_custom_call.1} parent=1 // pred_region
      %111 = dma.done [#allocation5], 16
    $region33: #{tpu_custom_call.1} parent=1 // pred_fallthru
      _
    %112 = vsyncpa [#allocation4], 1
    %113 = vsyncpa [#allocation7], 1
    %114 = vsyncpa [#allocation5], 1

</llo_original>
